<compile_context>
chip_gen: v7x
topology: tpu7x:2x2x1
jax: 0.10.0
libtpu: 0.0.40
codegen_flags: <defaults>
</compile_context>

<pallas_src>
import functools

import jax
import jax.numpy as jnp
from jax.experimental import pallas as pl
from jax.experimental.pallas import tpu as pltpu

IGNORE_INDEX = 250


def _masked_ce_kernel(out_ref, mask_ref, tgt_ref, sum_ref, cnt_ref, *, hw):
    """One grid step = one (1, C, TPIX) tile of logits/mask and (1, 1, TPIX) targets.

    out_ref  : (1, C, TPIX) raw logits
    mask_ref : (1, C, TPIX) mask (multiplies logits; channel 0 multiplies target)
    tgt_ref  : (1, 1, TPIX) raw (float) targets
    sum_ref  : (1, 1, 1, 128) partial sum of per-pixel losses (lane-broadcast)
    cnt_ref  : (1, 1, 1, 128) partial count of non-ignored pixels
    """
    p_idx = pl.program_id(1)
    _, c, tpix = out_ref.shape

    # Lane validity for the (possibly partial) last pixel chunk.
    lane = jax.lax.broadcasted_iota(jnp.int32, (1, tpix), 1)
    in_bounds = (p_idx * tpix + lane) < hw                            # (1, TPIX)

    # Masked logits; zero out-of-bounds lanes so stale VMEM can't poison exp().
    logits = out_ref[0].astype(jnp.float32) * mask_ref[0].astype(jnp.float32)
    logits = jnp.where(in_bounds, logits, 0.0)                        # (C, TPIX)

    # Masked-then-truncated integer targets: (target * mask[:,0]).astype(int)
    mask0 = mask_ref[0, 0:1, :].astype(jnp.float32)                   # (1, TPIX)
    t = (tgt_ref[0].astype(jnp.float32) * mask0).astype(jnp.int32)    # (1, TPIX)

    # log-sum-exp over classes (sublane axis).
    row_max = jnp.max(logits, axis=0, keepdims=True)                  # (1, TPIX)
    lse = row_max + jnp.log(
        jnp.sum(jnp.exp(logits - row_max), axis=0, keepdims=True))    # (1, TPIX)

    # Gather the target-class logit via a one-hot compare (no dynamic gather).
    class_ids = jax.lax.broadcasted_iota(jnp.int32, (c, tpix), 0)     # (C, TPIX)
    picked = jnp.sum(jnp.where(class_ids == t, logits, 0.0),
                     axis=0, keepdims=True)                           # (1, TPIX)

    valid = jnp.logical_and(in_bounds, t != IGNORE_INDEX)             # (1, TPIX)
    per_pixel = jnp.where(valid, lse - picked, 0.0)                   # (1, TPIX)

    s = jnp.sum(per_pixel, axis=1, keepdims=True)                     # (1, 1)
    cnt = jnp.sum(valid.astype(jnp.float32), axis=1, keepdims=True)   # (1, 1)

    sum_ref[0, 0, :, :] = jnp.broadcast_to(s, (1, 128))
    cnt_ref[0, 0, :, :] = jnp.broadcast_to(cnt, (1, 128))


def _choose_pix_tile(c, hw, requested):
    """Largest lane tile that is a multiple of 128 (or the full extent) while
    keeping the double-buffered logits+mask streams inside a modest VMEM
    budget (safe for v5e/v6e/v7x scoped-VMEM limits)."""
    if hw <= 128:
        return hw
    budget_bytes = 8 * 1024 * 1024            # 2 streams x 2 buffers x C x T x 4B
    max_t = budget_bytes // (2 * 2 * 4 * max(c, 1))
    t = min(requested, hw, max_t)
    return max(128, (t // 128) * 128)


@functools.partial(jax.jit, static_argnames=("pix_tile",))
def masked_cross_entropy(output, target, mask, *, pix_tile=2048):
    """output: (N,C,H,W) float, target: (N,H,W), mask: (N,C,H,W) float."""
    n, c, h, w = output.shape
    hw = h * w

    # Free reshapes only (merge trailing contiguous dims) -- no transpose/pad.
    logits = output.reshape(n, c, hw)
    mask_l = mask.reshape(n, c, hw)
    tgt = target.reshape(n, 1, hw)

    tpix = _choose_pix_tile(c, hw, pix_tile)
    num_p = pl.cdiv(hw, tpix)

    part_sum, part_cnt = pl.pallas_call(
        functools.partial(_masked_ce_kernel, hw=hw),
        out_shape=(
            jax.ShapeDtypeStruct((n, num_p, 1, 128), jnp.float32),
            jax.ShapeDtypeStruct((n, num_p, 1, 128), jnp.float32),
        ),
        grid_spec=pltpu.PrefetchScalarGridSpec(
            num_scalar_prefetch=0,
            grid=(n, num_p),
            in_specs=[
                pl.BlockSpec((1, c, tpix), lambda i, p: (i, 0, p)),
                pl.BlockSpec((1, c, tpix), lambda i, p: (i, 0, p)),
                pl.BlockSpec((1, 1, tpix), lambda i, p: (i, 0, p)),
            ],
            out_specs=(
                pl.BlockSpec((1, 1, 1, 128), lambda i, p: (i, p, 0, 0)),
                pl.BlockSpec((1, 1, 1, 128), lambda i, p: (i, p, 0, 0)),
            ),
        ),
        compiler_params=pltpu.CompilerParams(
            dimension_semantics=("parallel", "parallel"),
            vmem_limit_bytes=32 * 1024 * 1024,
        ),
    )(logits, mask_l, tgt)

    total = jnp.sum(part_sum[:, :, 0, 0])
    count = jnp.sum(part_cnt[:, :, 0, 0])
    # size_average=True -> mean over non-ignored pixels.
    # NOTE: if every pixel has target == IGNORE_INDEX this yields NaN, matching
    # PyTorch's mean-over-empty behaviour.
    return total / count


def _reference(output, target, mask):
    """Pure-JAX reference mirroring the PyTorch semantics."""
    n, c, h, w = output.shape
    logits = (output * mask).transpose(0, 2, 3, 1).reshape(-1, c)
    t = (target * mask[:, 0, :, :]).reshape(-1).astype(jnp.int32)
    lse = jax.scipy.special.logsumexp(logits, axis=-1)
    picked = jnp.take_along_axis(logits, t[:, None], axis=-1)[:, 0]
    valid = t != IGNORE_INDEX
    per = jnp.where(valid, lse - picked, 0.0)
    return jnp.sum(per) / jnp.sum(valid.astype(jnp.float32))


if __name__ == "__main__":
    # Module has no learned parameters; only inputs are needed.
    key = jax.random.PRNGKey(0)
    k1, k2, k3 = jax.random.split(key, 3)

    N, C, H, W = 2, 4, 16, 16
    output = jax.random.normal(k1, (N, C, H, W), dtype=jnp.float32)
    target = jax.random.randint(k2, (N, H, W), 0, C).astype(jnp.float32)
    mask = (jax.random.uniform(k3, (N, 1, H, W)) > 0.3).astype(jnp.float32)
    mask = jnp.broadcast_to(mask, (N, C, H, W))  # same mask across channels

    loss = masked_cross_entropy(output, target, mask)
    loss = jax.block_until_ready(loss)

    ref = _reference(output, target, mask)
    assert jnp.allclose(loss, ref, rtol=1e-5, atol=1e-5), (loss, ref)

    print("KERNEL_OK")
</pallas_src>

<mosaic_0001>
module attributes {stable_mosaic.version = 11 : i64} {
  func.func @_masked_ce_kernel(%arg0: i32, %arg1: i32, %arg2: memref<1x4x256xf32, #tpu.memory_space<vmem>>, %arg3: memref<1x4x256xf32, #tpu.memory_space<vmem>>, %arg4: memref<1x1x256xf32, #tpu.memory_space<vmem>>, %arg5: memref<1x1x1x128xf32, #tpu.memory_space<vmem>>, %arg6: memref<1x1x1x128xf32, #tpu.memory_space<vmem>>) attributes {dimension_semantics = [#tpu.dimension_semantics<parallel>, #tpu.dimension_semantics<parallel>], iteration_bounds = array<i64: 2, 1>, scalar_prefetch = 0 : i64, scratch_operands = 0 : i64, tpu.core_type = #tpu.core_type<tc>, window_params = [{transform_indices = @transform_0, window_bounds = array<i64: 1, 4, 256>}, {transform_indices = @transform_1, window_bounds = array<i64: 1, 4, 256>}, {transform_indices = @transform_2, window_bounds = array<i64: 1, 1, 256>}, {transform_indices = @transform_3, window_bounds = array<i64: 1, 1, 1, 128>}, {transform_indices = @transform_4, window_bounds = array<i64: 1, 1, 1, 128>}]} {
    %0 = tpu.iota {dimensions = array<i32: 1>} : vector<1x256xi32>
    %c256_i32 = arith.constant 256 : i32
    %1 = arith.muli %arg1, %c256_i32 : i32
    %2 = vector.broadcast %1 : i32 to vector<1x256xi32>
    %3 = arith.addi %2, %0 : vector<1x256xi32>
    %c256_i32_0 = arith.constant 256 : i32
    %4 = vector.broadcast %c256_i32_0 : i32 to vector<1x256xi32>
    %5 = arith.cmpi slt, %3, %4 : vector<1x256xi32>
    %c0 = arith.constant 0 : index
    %c0_1 = arith.constant 0 : index
    %c0_2 = arith.constant 0 : index
    %6 = vector.load %arg2[%c0, %c0_1, %c0_2] : memref<1x4x256xf32, #tpu.memory_space<vmem>>, vector<1x4x256xf32>
    %7 = vector.shape_cast %6 : vector<1x4x256xf32> to vector<4x256xf32>
    %c0_3 = arith.constant 0 : index
    %c0_4 = arith.constant 0 : index
    %c0_5 = arith.constant 0 : index
    %8 = vector.load %arg3[%c0_3, %c0_4, %c0_5] : memref<1x4x256xf32, #tpu.memory_space<vmem>>, vector<1x4x256xf32>
    %9 = vector.shape_cast %8 : vector<1x4x256xf32> to vector<4x256xf32>
    %10 = arith.mulf %7, %9 : vector<4x256xf32>
    %cst = arith.constant 0.000000e+00 : f32
    %11 = vector.shape_cast %5 : vector<1x256xi1> to vector<1x256xi1>
    %12 = vector.broadcast %11 : vector<1x256xi1> to vector<4x256xi1>
    %13 = vector.broadcast %cst : f32 to vector<4x256xf32>
    %14 = arith.select %12, %10, %13 : vector<4x256xi1>, vector<4x256xf32>
    %c0_6 = arith.constant 0 : index
    %c0_7 = arith.constant 0 : index
    %c0_8 = arith.constant 0 : index
    %15 = vector.load %arg3[%c0_6, %c0_7, %c0_8] : memref<1x4x256xf32, #tpu.memory_space<vmem>>, vector<1x1x256xf32>
    %16 = vector.shape_cast %15 : vector<1x1x256xf32> to vector<1x256xf32>
    %c0_9 = arith.constant 0 : index
    %c0_10 = arith.constant 0 : index
    %c0_11 = arith.constant 0 : index
    %17 = vector.load %arg4[%c0_9, %c0_10, %c0_11] : memref<1x1x256xf32, #tpu.memory_space<vmem>>, vector<1x1x256xf32>
    %18 = vector.shape_cast %17 : vector<1x1x256xf32> to vector<1x256xf32>
    %19 = arith.mulf %18, %16 : vector<1x256xf32>
    %20 = arith.fptosi %19 : vector<1x256xf32> to vector<1x256xi32>
    %cst_12 = arith.constant dense<0xFF800000> : vector<256xf32>
    %21 = vector.multi_reduction <maximumf>, %14, %cst_12 [0] : vector<4x256xf32> to vector<256xf32>
    %22 = vector.shape_cast %21 : vector<256xf32> to vector<1x256xf32>
    %23 = vector.broadcast %22 : vector<1x256xf32> to vector<4x256xf32>
    %24 = arith.subf %14, %23 : vector<4x256xf32>
    %25 = math.exp %24 : vector<4x256xf32>
    %cst_13 = arith.constant dense<0.000000e+00> : vector<256xf32>
    %26 = vector.multi_reduction <add>, %25, %cst_13 [0] : vector<4x256xf32> to vector<256xf32>
    %27 = vector.shape_cast %26 : vector<256xf32> to vector<1x256xf32>
    %28 = math.log %27 : vector<1x256xf32>
    %29 = arith.addf %22, %28 : vector<1x256xf32>
    %30 = tpu.iota {dimensions = array<i32: 0>} : vector<4x256xi32>
    %31 = vector.broadcast %20 : vector<1x256xi32> to vector<4x256xi32>
    %32 = arith.cmpi eq, %30, %31 : vector<4x256xi32>
    %cst_14 = arith.constant 0.000000e+00 : f32
    %33 = vector.broadcast %cst_14 : f32 to vector<4x256xf32>
    %34 = arith.select %32, %14, %33 : vector<4x256xi1>, vector<4x256xf32>
    %cst_15 = arith.constant dense<0.000000e+00> : vector<256xf32>
    %35 = vector.multi_reduction <add>, %34, %cst_15 [0] : vector<4x256xf32> to vector<256xf32>
    %36 = vector.shape_cast %35 : vector<256xf32> to vector<1x256xf32>
    %c250_i32 = arith.constant 250 : i32
    %37 = vector.broadcast %c250_i32 : i32 to vector<1x256xi32>
    %38 = arith.cmpi ne, %20, %37 : vector<1x256xi32>
    %39 = arith.andi %5, %38 : vector<1x256xi1>
    %40 = arith.subf %29, %36 : vector<1x256xf32>
    %cst_16 = arith.constant 0.000000e+00 : f32
    %41 = vector.broadcast %cst_16 : f32 to vector<1x256xf32>
    %42 = arith.select %39, %40, %41 : vector<1x256xi1>, vector<1x256xf32>
    %cst_17 = arith.constant dense<0.000000e+00> : vector<1xf32>
    %43 = vector.multi_reduction <add>, %42, %cst_17 [1] : vector<1x256xf32> to vector<1xf32>
    %44 = vector.shape_cast %43 : vector<1xf32> to vector<1x1xf32>
    %45 = arith.extui %39 : vector<1x256xi1> to vector<1x256xi32>
    %46 = arith.sitofp %45 : vector<1x256xi32> to vector<1x256xf32>
    %cst_18 = arith.constant dense<0.000000e+00> : vector<1xf32>
    %47 = vector.multi_reduction <add>, %46, %cst_18 [1] : vector<1x256xf32> to vector<1xf32>
    %48 = vector.shape_cast %47 : vector<1xf32> to vector<1x1xf32>
    %49 = vector.shape_cast %44 : vector<1x1xf32> to vector<1x1xf32>
    %50 = vector.broadcast %49 : vector<1x1xf32> to vector<1x128xf32>
    %c0_19 = arith.constant 0 : index
    %c0_20 = arith.constant 0 : index
    %c0_21 = arith.constant 0 : index
    %c0_22 = arith.constant 0 : index
    %51 = vector.load %arg5[%c0_19, %c0_20, %c0_21, %c0_22] : memref<1x1x1x128xf32, #tpu.memory_space<vmem>>, vector<1x1x1x128xf32>
    %52 = vector.shape_cast %51 : vector<1x1x1x128xf32> to vector<1x128xf32>
    %53 = vector.shape_cast %50 : vector<1x128xf32> to vector<1x1x1x128xf32>
    tpu.vector_store %arg5[%c0_19, %c0_20, %c0_21, %c0_22], %53 {strides = array<i32>} : memref<1x1x1x128xf32, #tpu.memory_space<vmem>>, vector<1x1x1x128xf32>,
    %54 = vector.shape_cast %48 : vector<1x1xf32> to vector<1x1xf32>
    %55 = vector.broadcast %54 : vector<1x1xf32> to vector<1x128xf32>
    %c0_23 = arith.constant 0 : index
    %c0_24 = arith.constant 0 : index
    %c0_25 = arith.constant 0 : index
    %c0_26 = arith.constant 0 : index
    %56 = vector.load %arg6[%c0_23, %c0_24, %c0_25, %c0_26] : memref<1x1x1x128xf32, #tpu.memory_space<vmem>>, vector<1x1x1x128xf32>
    %57 = vector.shape_cast %56 : vector<1x1x1x128xf32> to vector<1x128xf32>
    %58 = vector.shape_cast %55 : vector<1x128xf32> to vector<1x1x1x128xf32>
    tpu.vector_store %arg6[%c0_23, %c0_24, %c0_25, %c0_26], %58 {strides = array<i32>} : memref<1x1x1x128xf32, #tpu.memory_space<vmem>>, vector<1x1x1x128xf32>,
    return
  }
  func.func @transform_0(%arg0: i32, %arg1: i32) -> (i32, i32, i32) {
    %c0_i32 = arith.constant 0 : i32
    %c0_i32_0 = arith.constant 0 : i32
    return %arg0, %c0_i32, %arg1 : i32, i32, i32
  }
  func.func @transform_1(%arg0: i32, %arg1: i32) -> (i32, i32, i32) {
    %c0_i32 = arith.constant 0 : i32
    %c0_i32_0 = arith.constant 0 : i32
    return %arg0, %c0_i32, %arg1 : i32, i32, i32
  }
  func.func @transform_2(%arg0: i32, %arg1: i32) -> (i32, i32, i32) {
    %c0_i32 = arith.constant 0 : i32
    %c0_i32_0 = arith.constant 0 : i32
    return %arg0, %c0_i32, %arg1 : i32, i32, i32
  }
  func.func @transform_3(%arg0: i32, %arg1: i32) -> (i32, i32, i32, i32) {
    %c0_i32 = arith.constant 0 : i32
    %c0_i32_0 = arith.constant 0 : i32
    %c0_i32_1 = arith.constant 0 : i32
    return %arg0, %arg1, %c0_i32, %c0_i32_0 : i32, i32, i32, i32
  }
  func.func @transform_4(%arg0: i32, %arg1: i32) -> (i32, i32, i32, i32) {
    %c0_i32 = arith.constant 0 : i32
    %c0_i32_0 = arith.constant 0 : i32
    %c0_i32_1 = arith.constant 0 : i32
    return %arg0, %arg1, %c0_i32, %c0_i32_0 : i32, i32, i32, i32
  }
}

</mosaic_0001>

<llo_original>
// kernel: masked_cross_entropy.1
$region0: #{masked_cross_entropy.1}
  #allocation0 [shape = 'u32[]', space=smem, size = 0x4, offset = 0x4, fixed_abs, tag = 'smem constant byte address 0x4 - core index']
  #allocation1 [shape = 'u32[144,128]{1,0:T(1,128)}', space=vmem, size = 0x12000, scoped, tag = 'internal scratch']
  %s0 = inlined_call_operand.vmem [shape: f32[2,4,256], index: 0, kind: input, shape index: {}]
  %s1 = inlined_call_operand.vmem [shape: f32[2,4,256], index: 1, kind: input, shape index: {}]
  %s2 = inlined_call_operand.vmem [shape: f32[2,1,256], index: 2, kind: input, shape index: {}]
  %s3 = inlined_call_operand.vmem [shape: f32[2,1,1,128], index: 3, kind: output, shape index: {0}]
  %s4 = inlined_call_operand.vmem [shape: f32[2,1,1,128], index: 4, kind: output, shape index: {1}]
  %5 = xla_tuple %s3, %s4
  %s6 = sld [smem:[#allocation0]]
  $region53: #{masked_cross_entropy.1} parent=0
    _
  %s8 = ssub.s32 1, %s6
  %s9 = scalar_select 0, %s8, %s6
  loop: start=0, step=1, limit=4
  $region2: #{masked_cross_entropy.1} parent=0 // loop_pre_header
    _
  $region3: #{masked_cross_entropy.1} parent=0 // loop_header
    %s11 = sphi 0, %s15
    %p12 = scmp.ge.s32.totalorder %s11, 4
    %s18 = sphi 0, %s30
    %s19 = sphi 0, %s26
    %s20 = sphi 0, %s18
    %s21 = sphi 0, %s19
    %s22 = sphi 0, %s20
    %s23 = sphi 0, %s21
    %s35 = sphi 0, %s37
    %s38 = sphi 0, %s35
    %s39 = sphi 0, %s38
    %s55 = sphi 0, %s39
    %s63 = sphi 0, %s65
    %s66 = sphi 0, %s63
    %s67 = sphi 0, %s66
    %s83 = sphi 0, %s67
    %s91 = sphi 0, %s93
    %s94 = sphi 0, %s91
    %s95 = sphi 0, %s94
    %s111 = sphi 0, %s95
    %s119 = sphi 0, %s121
    %s122 = sphi 0, %s119
    %s123 = sphi 0, %s122
    %s139 = sphi 0, %s123
    %s147 = sphi 0, %s149
    %s150 = sphi 0, %s147
    %s151 = sphi 0, %s150
    %s167 = sphi 0, %s151
  $region4: #{masked_cross_entropy.1} parent=0 // loop_header_branch
    %14 = sbr.rel (%p12) target = $region8
  $region5: #{masked_cross_entropy.1} parent=0 // loop_body
    %s16 = ssub.s32 %s11, 1
    %s17 = ssub.s32 %s11, 2
    %s24 = sadd.s32 1, %s19
    %p25 = scmp.ge.s32.totalorder %s24, 1
    %s26 = scalar_select %p25, 0, %s24
    %s27 = sadd.s32 1, %s18
    %s28 = scalar_select %p25, %s27, %s18
    %p29 = scmp.ge.s32.totalorder %s28, 2
    %s30 = scalar_select %p29, 0, %s28
    %s31 = ssub.s32 %s18, %s30
    %s32 = ssub.s32 %s19, %s26
    %s33 = sor.u32 %s31, %s32
    %p34 = scmp.eq.s32.totalorder %s33, 0
    %s36 = sadd.s32 %s35, 1
    %s37 = scalar_select %p34, %s35, %s36
    %p40 = pneg %p34
    %p41 = scmp.eq.s32.totalorder %s11, 1
    %p42 = por %p40, %p41
    %p43 = scmp.ne.s32.totalorder %s35, %s38
    %p44 = scmp.eq.s32.totalorder %s11, 0
    %p45 = por %p43, %p44
    %p46 = scmp.ne.s32.totalorder %s35, %s38
    %p47 = scmp.eq.s32.totalorder %s16, 1
    %p48 = por %p46, %p47
    %p49 = scmp.ne.s32.totalorder %s38, %s39
    %p50 = scmp.eq.s32.totalorder %s16, 0
    %p51 = por %p49, %p50
    %p52 = scmp.ne.s32.totalorder %s38, %s39
    %p53 = scmp.eq.s32.totalorder %s17, 1
    %p54 = por %p52, %p53
    %p56 = scmp.ne.s32.totalorder %s39, %s55
    %p57 = scmp.eq.s32.totalorder %s17, 0
    %p58 = por %p56, %p57
    %s59 = ssub.s32 %s18, %s30
    %s60 = ssub.s32 %s19, %s26
    %s61 = sor.u32 %s59, %s60
    %p62 = scmp.eq.s32.totalorder %s61, 0
    %s64 = sadd.s32 %s63, 1
    %s65 = scalar_select %p62, %s63, %s64
    %p68 = pneg %p62
    %p69 = scmp.eq.s32.totalorder %s11, 1
    %p70 = por %p68, %p69
    %p71 = scmp.ne.s32.totalorder %s63, %s66
    %p72 = scmp.eq.s32.totalorder %s11, 0
    %p73 = por %p71, %p72
    %p74 = scmp.ne.s32.totalorder %s63, %s66
    %p75 = scmp.eq.s32.totalorder %s16, 1
    %p76 = por %p74, %p75
    %p77 = scmp.ne.s32.totalorder %s66, %s67
    %p78 = scmp.eq.s32.totalorder %s16, 0
    %p79 = por %p77, %p78
    %p80 = scmp.ne.s32.totalorder %s66, %s67
    %p81 = scmp.eq.s32.totalorder %s17, 1
    %p82 = por %p80, %p81
    %p84 = scmp.ne.s32.totalorder %s67, %s83
    %p85 = scmp.eq.s32.totalorder %s17, 0
    %p86 = por %p84, %p85
    %s87 = ssub.s32 %s18, %s30
    %s88 = ssub.s32 %s19, %s26
    %s89 = sor.u32 %s87, %s88
    %p90 = scmp.eq.s32.totalorder %s89, 0
    %s92 = sadd.s32 %s91, 1
    %s93 = scalar_select %p90, %s91, %s92
    %p96 = pneg %p90
    %p97 = scmp.eq.s32.totalorder %s11, 1
    %p98 = por %p96, %p97
    %p99 = scmp.ne.s32.totalorder %s91, %s94
    %p100 = scmp.eq.s32.totalorder %s11, 0
    %p101 = por %p99, %p100
    %p102 = scmp.ne.s32.totalorder %s91, %s94
    %p103 = scmp.eq.s32.totalorder %s16, 1
    %p104 = por %p102, %p103
    %p105 = scmp.ne.s32.totalorder %s94, %s95
    %p106 = scmp.eq.s32.totalorder %s16, 0
    %p107 = por %p105, %p106
    %p108 = scmp.ne.s32.totalorder %s94, %s95
    %p109 = scmp.eq.s32.totalorder %s17, 1
    %p110 = por %p108, %p109
    %p112 = scmp.ne.s32.totalorder %s95, %s111
    %p113 = scmp.eq.s32.totalorder %s17, 0
    %p114 = por %p112, %p113
    %s115 = ssub.s32 %s18, %s30
    %s116 = ssub.s32 %s19, %s26
    %s117 = sor.u32 %s115, %s116
    %p118 = scmp.eq.s32.totalorder %s117, 0
    %s120 = sadd.s32 %s119, 1
    %s121 = scalar_select %p118, %s119, %s120
    %p124 = pneg %p118
    %p125 = scmp.eq.s32.totalorder %s11, 1
    %p126 = por %p124, %p125
    %p127 = scmp.ne.s32.totalorder %s119, %s122
    %p128 = scmp.eq.s32.totalorder %s11, 0
    %p129 = por %p127, %p128
    %p130 = scmp.ne.s32.totalorder %s119, %s122
    %p131 = scmp.eq.s32.totalorder %s16, 1
    %p132 = por %p130, %p131
    %p133 = scmp.ne.s32.totalorder %s122, %s123
    %p134 = scmp.eq.s32.totalorder %s16, 0
    %p135 = por %p133, %p134
    %p136 = scmp.ne.s32.totalorder %s122, %s123
    %p137 = scmp.eq.s32.totalorder %s17, 1
    %p138 = por %p136, %p137
    %p140 = scmp.ne.s32.totalorder %s123, %s139
    %p141 = scmp.eq.s32.totalorder %s17, 0
    %p142 = por %p140, %p141
    %s143 = ssub.s32 %s18, %s30
    %s144 = ssub.s32 %s19, %s26
    %s145 = sor.u32 %s143, %s144
    %p146 = scmp.eq.s32.totalorder %s145, 0
    %s148 = sadd.s32 %s147, 1
    %s149 = scalar_select %p146, %s147, %s148
    %p152 = pneg %p146
    %p153 = scmp.eq.s32.totalorder %s11, 1
    %p154 = por %p152, %p153
    %p155 = scmp.ne.s32.totalorder %s147, %s150
    %p156 = scmp.eq.s32.totalorder %s11, 0
    %p157 = por %p155, %p156
    %p158 = scmp.ne.s32.totalorder %s147, %s150
    %p159 = scmp.eq.s32.totalorder %s16, 1
    %p160 = por %p158, %p159
    %p161 = scmp.ne.s32.totalorder %s150, %s151
    %p162 = scmp.eq.s32.totalorder %s16, 0
    %p163 = por %p161, %p162
    %p164 = scmp.ne.s32.totalorder %s150, %s151
    %p165 = scmp.eq.s32.totalorder %s17, 1
    %p166 = por %p164, %p165
    %p168 = scmp.ne.s32.totalorder %s151, %s167
    %p169 = scmp.eq.s32.totalorder %s17, 0
    %p170 = por %p168, %p169
    %p171 = scmp.le.s32.totalorder 1, %s11
    %p172 = scmp.lt.s32.totalorder %s11, 3
    %p173 = pnand %p171, %p172
    %p174 = pneg %p173
    // Predicated region
    $region9: #{masked_cross_entropy.1} parent=5 // pred_check
      _
    $region10: #{masked_cross_entropy.1} parent=5 // pred_check_branch
      %176 = sbr.rel (%p173) target = $region12
    $region11: #{masked_cross_entropy.1} parent=5 // pred_region
      %s177 = ssub.s32 %s11, 1
    $region12: #{masked_cross_entropy.1} parent=5 // pred_fallthru
      _
    %p178 = scmp.lt.s32.totalorder %s11, 2
    // Predicated region
    $region13: #{masked_cross_entropy.1} parent=5 // pred_check
      %p179 = pneg %p178
    $region14: #{masked_cross_entropy.1} parent=5 // pred_check_branch
      %181 = sbr.rel (%p179) target = $region16
    $region15: #{masked_cross_entropy.1} parent=5 // pred_region
      // Predicated region
      $region17: #{masked_cross_entropy.1} parent=15 // pred_check
        %p182 = pneg %p45
      $region18: #{masked_cross_entropy.1} parent=15 // pred_check_branch
        %184 = sbr.rel (%p182) target = $region20
      $region19: #{masked_cross_entropy.1} parent=15 // pred_region
        %s185 = smul.u32 2, %s19
        %p186 = scmp.lt.s32.totalorder %s18, 1
        %s187 = scalar_select %p186, %s18, 1
        %p188 = scmp.lt.s32.totalorder %s185, 1
        %s189 = scalar_select %p188, %s185, 1
        %s190 = smul.addr %s187, 2
        %s191 = sadd.s32 %s189, %s190
        %s192 = smul.addr %s191, 4
        %s193 = scalar_lea.vmem %s0, %s192
        %s194 = smul.u32 2, %s19
      $region20: #{masked_cross_entropy.1} parent=15 // pred_fallthru
        _
      // Predicated region
      $region21: #{masked_cross_entropy.1} parent=15 // pred_check
        %p195 = pneg %p73
      $region22: #{masked_cross_entropy.1} parent=15 // pred_check_branch
        %197 = sbr.rel (%p195) target = $region24
      $region23: #{masked_cross_entropy.1} parent=15 // pred_region
        %s198 = smul.u32 2, %s19
        %p199 = scmp.lt.s32.totalorder %s18, 1
        %s200 = scalar_select %p199, %s18, 1
        %p201 = scmp.lt.s32.totalorder %s198, 1
        %s202 = scalar_select %p201, %s198, 1
        %s203 = smul.addr %s200, 2
        %s204 = sadd.s32 %s202, %s203
        %s205 = smul.addr %s204, 4
        %s206 = scalar_lea.vmem %s1, %s205
        %s207 = smul.u32 2, %s19
      $region24: #{masked_cross_entropy.1} parent=15 // pred_fallthru
        _
      // Predicated region
      $region25: #{masked_cross_entropy.1} parent=15 // pred_check
        %p208 = pneg %p101
      $region26: #{masked_cross_entropy.1} parent=15 // pred_check_branch
        %210 = sbr.rel (%p208) target = $region28
      $region27: #{masked_cross_entropy.1} parent=15 // pred_region
        %s211 = smul.u32 2, %s19
        %p212 = scmp.lt.s32.totalorder %s18, 1
        %s213 = scalar_select %p212, %s18, 1
        %p214 = scmp.lt.s32.totalorder %s211, 1
        %s215 = scalar_select %p214, %s211, 1
        %s216 = smul.addr %s213, 2
        %s217 = sadd.s32 %s215, %s216
        %s218 = scalar_lea.vmem %s2, %s217
        %s219 = smul.u32 2, %s19
      $region28: #{masked_cross_entropy.1} parent=15 // pred_fallthru
        _
    $region16: #{masked_cross_entropy.1} parent=5 // pred_fallthru
      _
    %p220 = scmp.le.s32.totalorder 1, %s11
    %p221 = scmp.lt.s32.totalorder %s11, 3
    %p222 = pnand %p220, %p221
    %p223 = pneg %p222
    // Predicated region
    $region29: #{masked_cross_entropy.1} parent=5 // pred_check
      _
    $region30: #{masked_cross_entropy.1} parent=5 // pred_check_branch
      %225 = sbr.rel (%p222) target = $region32
    $region31: #{masked_cross_entropy.1} parent=5 // pred_region
      %s226 = ssub.s32 %s11, 1
      %s227 = smul.u32 2, %s21
      %p228 = scmp.lt.s32.totalorder %s20, 1
      %s229 = scalar_select %p228, %s20, 1
      %p230 = scmp.lt.s32.totalorder %s227, 1
      %s231 = scalar_select %p230, %s227, 1
      %s232 = smul.addr %s229, 2
      %s233 = sadd.s32 %s231, %s232
      %s234 = smul.addr %s233, 4
      %s235 = scalar_lea.vmem %s0, %s234
      %p236 = pneg %p51
      %p237 = pneg %p48
      %s238 = smul.u32 2, %s21
      %p239 = scmp.lt.s32.totalorder %s20, 1
      %s240 = scalar_select %p239, %s20, 1
      %p241 = scmp.lt.s32.totalorder %s238, 1
      %s242 = scalar_select %p241, %s238, 1
      %s243 = smul.addr %s240, 2
      %s244 = sadd.s32 %s242, %s243
      %s245 = smul.addr %s244, 4
      %s246 = scalar_lea.vmem %s1, %s245
      %p247 = pneg %p79
      %p248 = pneg %p76
      %s249 = smul.u32 2, %s21
      %p250 = scmp.lt.s32.totalorder %s20, 1
      %s251 = scalar_select %p250, %s20, 1
      %p252 = scmp.lt.s32.totalorder %s249, 1
      %s253 = scalar_select %p252, %s249, 1
      %s254 = smul.addr %s251, 2
      %s255 = sadd.s32 %s253, %s254
      %s256 = scalar_lea.vmem %s2, %s255
      %p257 = pneg %p107
      %p258 = pneg %p104
      %p259 = pneg %p135
      %p260 = pneg %p132
      %p261 = scmp.lt.s32.totalorder %s20, 1
      %s262 = scalar_select %p261, %s20, 1
      %p263 = scmp.lt.s32.totalorder %s21, 0
      %s264 = scalar_select %p263, %s21, 0
      %s265 = sadd.s32 %s264, %s262
      %s266 = scalar_lea.vmem %s3, %s265
      %p267 = pneg %p163
      %p268 = pneg %p160
      %p269 = scmp.lt.s32.totalorder %s20, 1
      %s270 = scalar_select %p269, %s20, 1
      %p271 = scmp.lt.s32.totalorder %s21, 0
      %s272 = scalar_select %p271, %s21, 0
      %s273 = sadd.s32 %s272, %s270
      %s274 = scalar_lea.vmem %s4, %s273
      %s275 = smul.u32 2, %s21
      %p276 = scmp.lt.s32.totalorder %s20, 1
      %s277 = scalar_select %p276, %s20, 1
      %p278 = scmp.lt.s32.totalorder %s275, 1
      %s279 = scalar_select %p278, %s275, 1
      %s280 = smul.addr %s277, 2
      %s281 = sadd.s32 %s279, %s280
      %s282 = smul.addr %s281, 4
      %s283 = scalar_lea.vmem %s0, %s282
      %s284 = smul.u32 2, %s21
      %s285 = smul.u32 2, %s21
      %p286 = scmp.lt.s32.totalorder %s20, 1
      %s287 = scalar_select %p286, %s20, 1
      %p288 = scmp.lt.s32.totalorder %s285, 1
      %s289 = scalar_select %p288, %s285, 1
      %s290 = smul.addr %s287, 2
      %s291 = sadd.s32 %s289, %s290
      %s292 = smul.addr %s291, 4
      %s293 = scalar_lea.vmem %s1, %s292
      %s294 = smul.u32 2, %s21
      %s295 = smul.u32 2, %s21
      %p296 = scmp.lt.s32.totalorder %s20, 1
      %s297 = scalar_select %p296, %s20, 1
      %p298 = scmp.lt.s32.totalorder %s295, 1
      %s299 = scalar_select %p298, %s295, 1
      %s300 = smul.addr %s297, 2
      %s301 = sadd.s32 %s299, %s300
      %s302 = scalar_lea.vmem %s2, %s301
      %s303 = smul.u32 2, %s21
      %p304 = scmp.lt.s32.totalorder %s20, 1
      %s305 = scalar_select %p304, %s20, 1
      %p306 = scmp.lt.s32.totalorder %s21, 0
      %s307 = scalar_select %p306, %s21, 0
      %s308 = sadd.s32 %s307, %s305
      %s309 = scalar_lea.vmem %s3, %s308
      %p310 = scmp.lt.s32.totalorder %s20, 1
      %s311 = scalar_select %p310, %s20, 1
      %p312 = scmp.lt.s32.totalorder %s21, 0
      %s313 = scalar_select %p312, %s21, 0
      %s314 = sadd.s32 %s313, %s311
      %s315 = scalar_lea.vmem %s4, %s314
      %v316 = vlaneseq
      %v317 = vand.u32 %v316, 127
      %v318 = vadd.s32 %v317, 128
      %s319 = smul.u32 %s21, 256
      %v320 = vstv %s319
      %v321 = vadd.s32 %v320, %v317
      %v322 = vadd.s32 %v320, %v318
      %vm323 = vcmp.lt.s32.totalorder %v321, 256
      %vm324 = vcmp.lt.s32.totalorder %v322, 256
      %v325 = vld [vmem:[%s283] sm:$0xff]
      %v326 = vld [vmem:[%s293] sm:$0xff]
      %v327 = vmul.f32 %v325, %v326
      %v328 = vsel %vm323, 1, 0
      %v329 = vsel %vm324, 1, 0
      %vm330 = vcmp.eq.s32.totalorder %v328, 1
      %vm331 = vcmp.eq.s32.totalorder %v329, 1
      %v333 = vcombine.high %v327, %v327
      %v335 = vsel %vm330, %v327, 0.0
      %v336 = vsel %vm331, %v333, 0.0
      %v337 = vld [vmem:[%s293] ss:$4 sm:$0x3]
      %v338 = vld [vmem:[%s302] sm:$0x3]
      %v339 = vmul.f32 %v338, %v337
      %v340 = vcvt.f32.s32.to.zero.pseudo %v339
      %vm341 = vcmask 1043456
      %v342 = vsel %vm341, %v335, -inf
      %v343 = vrot.slane %v342, 4
      %v344 = vmax.f32 %v342, %v343
      %v345 = vrot.slane %v344, 2
      %v346 = vmax.f32 %v344, %v345
      %v347 = vrot.slane %v346, 1
      %v348 = vmax.f32 %v346, %v347
      %v349 = vsel %vm341, %v336, -inf
      %v350 = vrot.slane %v349, 4
      %v351 = vmax.f32 %v349, %v350
      %v352 = vrot.slane %v351, 2
      %v353 = vmax.f32 %v351, %v352
      %v354 = vrot.slane %v353, 1
      %v355 = vmax.f32 %v353, %v354
      %v356 = vsub.f32 %v335, %v348
      %v357 = vsub.f32 %v336, %v355
      %v358 = vmul.f32 %v356, 1.442695
      %v359 = vpow.pop %v358
      %v360 = vmul.f32 %v357, 1.442695
      %v361 = vpow.pop %v360
      %v362 = vsel %vm341, %v359, 0.0
      %v363 = vrot.slane %v362, 4
      %v364 = vadd.f32 %v362, %v363
      %v365 = vrot.slane %v364, 2
      %v366 = vadd.f32 %v364, %v365
      %v367 = vrot.slane %v366, 1
      %v368 = vadd.f32 %v366, %v367
      %v369 = vsel %vm341, %v361, 0.0
      %v370 = vrot.slane %v369, 4
      %v371 = vadd.f32 %v369, %v370
      %v372 = vrot.slane %v371, 2
      %v373 = vadd.f32 %v371, %v372
      %v374 = vrot.slane %v373, 1
      %v375 = vadd.f32 %v373, %v374
      %v376 = vlog2.pop %v368
      %v377 = vmul.f32 %v376, 0.6931472
      %v378 = vlog2.pop %v375
      %v379 = vmul.f32 %v378, 0.6931472
      %v380 = vadd.f32 %v348, %v377
      %v381 = vadd.f32 %v355, %v379
      %v382 = vlaneseq
      %v383 = vshrl.u32 %v382, 7
      %v384 = vlaneseq
      %v385 = vshrl.u32 %v384, 7
      %v386 = vsub.s32 0, %v385
      %v387 = vrot.slane %v340, %v386
      %v388 = vlaneseq
      %v389 = vshrl.u32 %v388, 7
      %v390 = vsub.s32 1, %v389
      %v391 = vrot.slane %v340, %v390
      %vm392 = vcmp.eq.s32.totalorder %v383, %v387
      %vm393 = vcmp.eq.s32.totalorder %v383, %v391
      %v394 = vsel %vm392, %v335, 0.0
      %v395 = vsel %vm393, %v336, 0.0
      %v396 = vsel %vm341, %v394, 0.0
      %v397 = vrot.slane %v396, 4
      %v398 = vadd.f32 %v396, %v397
      %v399 = vrot.slane %v398, 2
      %v400 = vadd.f32 %v398, %v399
      %v401 = vrot.slane %v400, 1
      %v402 = vadd.f32 %v400, %v401
      %v403 = vsel %vm341, %v395, 0.0
      %v404 = vrot.slane %v403, 4
      %v405 = vadd.f32 %v403, %v404
      %v406 = vrot.slane %v405, 2
      %v407 = vadd.f32 %v405, %v406
      %v408 = vrot.slane %v407, 1
      %v409 = vadd.f32 %v407, %v408
      %vm410 = vcmp.ne.s32.totalorder %v340, 250
      %v411 = vsel %vm410, 1, 0
      %v412 = vlaneseq
      %v413 = vshrl.u32 %v412, 7
      %v414 = vsub.s32 0, %v413
      %v415 = vrot.slane %v411, %v414
      %v416 = vlaneseq
      %v417 = vshrl.u32 %v416, 7
      %v418 = vsub.s32 1, %v417
      %v419 = vrot.slane %v411, %v418
      %vm420 = vcmp.ne.s32.totalorder %v415, 0
      %vm421 = vcmp.ne.s32.totalorder %v419, 0
      %vm422 = vmand %vm323, %vm420
      %vm423 = vmand %vm324, %vm421
      %v424 = vsub.f32 %v380, %v402
      %v425 = vsub.f32 %v381, %v409
      %v426 = vsel %vm422, %v424, 0.0
      %v427 = vsel %vm423, %v425, 0.0
      %vm428 = vcmask 1040384
      %v429 = vsel %vm428, %v426, 0.0
      %v430 = vsel %vm428, %v427, 0.0
      %v431 = vadd.f32 %v429, %v430
      %432 = vadd.xlane.f32.xlu0 %v431
      %v433 = vpop.xlane.xlu0 %432
      %v434 = vsel %vm422, 1, 0
      %v435 = vsel %vm423, 1, 0
      %v436 = vcvt.s32.f32 %v434
      %v437 = vcvt.s32.f32 %v435
      %v438 = vsel %vm428, %v436, 0.0
      %v439 = vsel %vm428, %v437, 0.0
      %v440 = vadd.f32 %v438, %v439
      %441 = vadd.xlane.f32.xlu0 %v440
      %v442 = vpop.xlane.xlu0 %441
      %443 = vst [vmem:[%s309] sm:$0x1] %v433
      %444 = vst [vmem:[%s315] sm:$0x1] %v442
      %p445 = scmp.lt.s32.totalorder %s20, 1
      %s446 = scalar_select %p445, %s20, 1
      %p447 = scmp.lt.s32.totalorder %s21, 0
      %s448 = scalar_select %p447, %s21, 0
      %s449 = sadd.s32 %s448, %s446
      %s450 = scalar_lea.vmem %s3, %s449
      %p451 = scmp.lt.s32.totalorder %s20, 1
      %s452 = scalar_select %p451, %s20, 1
      %p453 = scmp.lt.s32.totalorder %s21, 0
      %s454 = scalar_select %p453, %s21, 0
      %s455 = sadd.s32 %s454, %s452
      %s456 = scalar_lea.vmem %s4, %s455
      // Predicated region
      $region33: #{masked_cross_entropy.1} parent=31 // pred_check
        %p457 = pneg %p132
      $region34: #{masked_cross_entropy.1} parent=31 // pred_check_branch
        %459 = sbr.rel (%p457) target = $region36
      $region35: #{masked_cross_entropy.1} parent=31 // pred_region
        _
      $region36: #{masked_cross_entropy.1} parent=31 // pred_fallthru
        _
      // Predicated region
      $region37: #{masked_cross_entropy.1} parent=31 // pred_check
        %p460 = pneg %p160
      $region38: #{masked_cross_entropy.1} parent=31 // pred_check_branch
        %462 = sbr.rel (%p460) target = $region40
      $region39: #{masked_cross_entropy.1} parent=31 // pred_region
        _
      $region40: #{masked_cross_entropy.1} parent=31 // pred_fallthru
        _
    $region32: #{masked_cross_entropy.1} parent=5 // pred_fallthru
      _
    %p463 = scmp.le.s32.totalorder 2, %s11
    // Predicated region
    $region41: #{masked_cross_entropy.1} parent=5 // pred_check
      %p464 = pneg %p463
    $region42: #{masked_cross_entropy.1} parent=5 // pred_check_branch
      %466 = sbr.rel (%p464) target = $region44
    $region43: #{masked_cross_entropy.1} parent=5 // pred_region
      %s467 = ssub.s32 %s11, 2
      // Predicated region
      $region45: #{masked_cross_entropy.1} parent=43 // pred_check
        %p468 = pneg %p138
      $region46: #{masked_cross_entropy.1} parent=43 // pred_check_branch
        %470 = sbr.rel (%p468) target = $region48
      $region47: #{masked_cross_entropy.1} parent=43 // pred_region
        %p471 = scmp.lt.s32.totalorder %s22, 1
        %s472 = scalar_select %p471, %s22, 1
        %p473 = scmp.lt.s32.totalorder %s23, 0
        %s474 = scalar_select %p473, %s23, 0
        %s475 = sadd.s32 %s474, %s472
        %s476 = scalar_lea.vmem %s3, %s475
      $region48: #{masked_cross_entropy.1} parent=43 // pred_fallthru
        _
      // Predicated region
      $region49: #{masked_cross_entropy.1} parent=43 // pred_check
        %p477 = pneg %p166
      $region50: #{masked_cross_entropy.1} parent=43 // pred_check_branch
        %479 = sbr.rel (%p477) target = $region52
      $region51: #{masked_cross_entropy.1} parent=43 // pred_region
        %p480 = scmp.lt.s32.totalorder %s22, 1
        %s481 = scalar_select %p480, %s22, 1
        %p482 = scmp.lt.s32.totalorder %s23, 0
        %s483 = scalar_select %p482, %s23, 0
        %s484 = sadd.s32 %s483, %s481
        %s485 = scalar_lea.vmem %s4, %s484
      $region52: #{masked_cross_entropy.1} parent=43 // pred_fallthru
        _
    $region44: #{masked_cross_entropy.1} parent=5 // pred_fallthru
      _
  $region6: #{masked_cross_entropy.1} parent=0 // loop_footer
    %s15 = sadd.s32 1, %s11
  $region7: #{masked_cross_entropy.1} parent=0 // loop_footer_branch
    %10 = sbr.rel target = $region3
  $region8: #{masked_cross_entropy.1} parent=0 // loop_exit
    _

</llo_original>
